<compile_context>
chip_gen: v7x
topology: tpu7x:2x2x1
jax: 0.10.0
libtpu: 0.0.40
codegen_flags: <defaults>
</compile_context>

<pallas_src>
import jax
import jax.numpy as jnp
from jax.experimental import pallas as pl
from jax.experimental.pallas import tpu as pltpu


# ----------------------------------------------------------------------------
# Helpers
# ----------------------------------------------------------------------------
def _round_up(x: int, m: int) -> int:
    return ((x + m - 1) // m) * m


def _tpu_topology():
    """(physical VMEM bytes per TensorCore, #TensorCores per chip), with safe fallbacks."""
    vmem = 128 * 2**20
    try:
        info = pltpu.get_tpu_info()
        vmem = int(getattr(info, "vmem_capacity_bytes", vmem))
    except Exception:
        pass
    num_tc = 1
    try:
        num_tc = int(getattr(jax.devices()[0], "num_cores", 1))
    except Exception:
        pass
    # v7x heuristic: 64 MiB VMEM per TC  <=>  2 TensorCores per chip.
    if vmem <= 64 * 2**20:
        num_tc = max(num_tc, 2)
    return vmem, num_tc


def _vmem_limit_bytes(physical_vmem: int) -> int:
    # v7x: 64 MiB physical / TC -> leave headroom; v5e/v6e: 128 MiB physical.
    return int(30 * 2**20) if physical_vmem <= 64 * 2**20 else int(64 * 2**20)


# Tile caps (bf16 operands, f32 accumulation). Working set at (512,512,1024)
# bf16 is ~6-7 MiB double-buffered -- comfortably inside every generation's
# budget while amortizing per-grid-step overhead and HBM re-streaming.
_TM_MAX = 512
_TN_MAX = 512
_TK_MAX = 1024


def _choose_nk_tiles(N, K, num_tc, tn_max=_TN_MAX, tk_max=_TK_MAX):
    n128 = _round_up(N, 128)
    tn = min(tn_max, n128)
    tk = min(tk_max, _round_up(K, 128))
    # Megacore (v7x): guarantee >= 2 tiles along j when N allows it, so the
    # "parallel" grid axes can be sharded across both TensorCores.
    if num_tc >= 2 and n128 // tn < 2 and n128 >= 256:
        tn = _round_up(n128 // 2, 128)
    return tn, tk


def _choose_m_tile(B, grid_j, num_tc, tm_max=_TM_MAX):
    b16 = _round_up(B, 16)  # bf16 sublane packing -> tm multiple of 16
    tm = min(tm_max, b16)
    # Megacore fallback: if N could not be split, split the batch instead.
    if num_tc >= 2 and grid_j < 2 and b16 // tm < 2 and b16 >= 32:
        tm = _round_up(b16 // 2, 16)
    return tm


# ----------------------------------------------------------------------------
# Kernels
# ----------------------------------------------------------------------------
def _linear_relu_kernel_f32(x_ref, wt_ref, b_ref, o_ref):
    """f32 output: accumulate directly in the K-resident output block (no scratch)."""
    k = pl.program_id(2)
    prod = jnp.dot(x_ref[...], wt_ref[...], preferred_element_type=jnp.float32)

    @pl.when(k == 0)
    def _():
        o_ref[...] = prod          # assign-on-first-K: no zero-init store

    @pl.when(k != 0)
    def _():
        o_ref[...] += prod

    @pl.when(k == pl.num_programs(2) - 1)
    def _():
        o_ref[...] = jnp.maximum(o_ref[...] + b_ref[...], 0.0)


def _linear_relu_kernel_acc(x_ref, wt_ref, b_ref, o_ref, acc_ref):
    """Narrow output dtype: f32 VMEM accumulator, cast in the epilogue."""
    k = pl.program_id(2)
    prod = jnp.dot(x_ref[...], wt_ref[...], preferred_element_type=jnp.float32)

    @pl.when(k == 0)
    def _():
        acc_ref[...] = prod

    @pl.when(k != 0)
    def _():
        acc_ref[...] += prod

    @pl.when(k == pl.num_programs(2) - 1)
    def _():
        o_ref[...] = jnp.maximum(acc_ref[...] + b_ref[...], 0.0).astype(o_ref.dtype)


def _linear_relu_pallas(x_p, wT_p, bias_row, *, tm, tn, tk, out_dtype, vmem_limit):
    """relu(x_p @ wT_p + bias) on zero-padded, tile-aligned operands."""
    Bp, Kp = x_p.shape
    Kp2, Np = wT_p.shape
    assert Kp == Kp2
    grid = (Bp // tm, Np // tn, Kp // tk)

    f32_out = jnp.dtype(out_dtype) == jnp.dtype(jnp.float32)
    kernel = _linear_relu_kernel_f32 if f32_out else _linear_relu_kernel_acc
    scratch = [] if f32_out else [pltpu.VMEM((tm, tn), jnp.float32)]

    return pl.pallas_call(
        kernel,
        out_shape=jax.ShapeDtypeStruct((Bp, Np), out_dtype),
        grid=grid,
        in_specs=[
            pl.BlockSpec((tm, tk), lambda i, j, k: (i, k)),   # x tile
            pl.BlockSpec((tk, tn), lambda i, j, k: (k, j)),   # W^T tile (lane-dense N)
            pl.BlockSpec((1, tn), lambda i, j, k: (0, j)),    # bias tile (f32)
        ],
        out_specs=pl.BlockSpec((tm, tn), lambda i, j, k: (i, j)),
        scratch_shapes=scratch,
        compiler_params=pltpu.CompilerParams(
            dimension_semantics=("parallel", "parallel", "arbitrary"),
            vmem_limit_bytes=vmem_limit,
        ),
    )(x_p, wT_p, bias_row)


# ----------------------------------------------------------------------------
# Module
# ----------------------------------------------------------------------------
class SimplexNeuron:
    """JAX/Pallas mirror of the PyTorch SimplexNeuron module."""

    def __init__(self, weight, bias, use_bf16=True,
                 tm_max=_TM_MAX, tn_max=_TN_MAX, tk_max=_TK_MAX):
        self.weight = weight
        self.bias = bias
        # Same derived quantity as the PyTorch __init__ (plain-JAX glue, not
        # part of the forward kernel).
        b_col = bias[:, None]
        self.simplex_coefficient = jax.nn.relu(weight + b_col) - jax.nn.relu(b_col)
        self.preact_lb = None
        self.preact_ub = None

        N, K = weight.shape
        self.N, self.K = N, K
        self._tm_max = tm_max

        self._vmem_phys, self._num_tc = _tpu_topology()
        self._vmem_limit = _vmem_limit_bytes(self._vmem_phys)
        self._tn, self._tk = _choose_nk_tiles(N, K, self._num_tc, tn_max, tk_max)
        self._Np = _round_up(N, self._tn)
        self._Kp = _round_up(K, self._tk)

        # One-time (cached) layout plumbing: (K, N) RHS in the operand dtype,
        # zero-padded to tile multiples; bias as a padded f32 row.
        self._op_dtype = jnp.bfloat16 if use_bf16 else weight.dtype
        wT = weight.T.astype(self._op_dtype)
        if (self._Kp, self._Np) != (K, N):
            wT = jnp.pad(wT, ((0, self._Kp - K), (0, self._Np - N)))
        self._wT = wT
        bias_row = bias.reshape(1, N).astype(jnp.float32)
        if self._Np != N:
            bias_row = jnp.pad(bias_row, ((0, 0), (0, self._Np - N)))
        self._bias_row = bias_row

    def __call__(self, x):
        B, K = x.shape
        assert K == self.K, "x in_features must match weight"
        out_dtype = x.dtype

        grid_j = self._Np // self._tn
        tm = _choose_m_tile(B, grid_j, self._num_tc, self._tm_max)
        Bp = _round_up(B, tm)

        x_p = x.astype(self._op_dtype)               # normalize operand dtype
        if (Bp, self._Kp) != (B, K):
            x_p = jnp.pad(x_p, ((0, Bp - B), (0, self._Kp - K)))

        out = _linear_relu_pallas(
            x_p, self._wT, self._bias_row,
            tm=tm, tn=self._tn, tk=self._tk,
            out_dtype=out_dtype, vmem_limit=self._vmem_limit)

        if (Bp, self._Np) != (B, self.N):
            out = out[:B, :self.N]
        return out


def simplex_neuron_forward(x, weight, bias, use_bf16=True):
    """Functional convenience wrapper (prefer the class: it caches W^T)."""
    return SimplexNeuron(weight, bias, use_bf16=use_bf16)(x)


# ----------------------------------------------------------------------------
# Demo / self-test
# ----------------------------------------------------------------------------
if __name__ == "__main__":
    key = jax.random.PRNGKey(0)
    k_w, k_b, k_x = jax.random.split(key, 3)

    batch, in_features, out_features = 32, 512, 256
    weight = jax.random.normal(k_w, (out_features, in_features), jnp.float32)
    bias = jax.random.normal(k_b, (out_features,), jnp.float32)
    x = jax.random.normal(k_x, (batch, in_features), jnp.float32)

    # Reference with the same bf16-quantized operands, f32 accumulation.
    x_q = x.astype(jnp.bfloat16).astype(jnp.float32)
    w_q = weight.astype(jnp.bfloat16).astype(jnp.float32)
    ref = jax.nn.relu(x_q @ w_q.T + bias)

    # 1) Default tiles (single K step at this K), f32-output kernel path.
    neuron = SimplexNeuron(weight, bias)
    out = jax.block_until_ready(neuron(x))
    assert out.shape == (batch, out_features) and out.dtype == jnp.float32
    assert jnp.allclose(out, ref, atol=5e-3, rtol=5e-3), "mismatch (default tiles)"

    # 2) Small tiles: exercises the multi-step K reduction and j tiling.
    neuron_small = SimplexNeuron(weight, bias, tn_max=128, tk_max=128)
    out_small = jax.block_until_ready(neuron_small(x))
    assert jnp.allclose(out_small, ref, atol=5e-3, rtol=5e-3), "mismatch (small tiles)"

    # 3) bf16 activations: exercises the scratch-accumulator (narrow output) path.
    out_bf16 = jax.block_until_ready(neuron(x.astype(jnp.bfloat16)))
    assert out_bf16.dtype == jnp.bfloat16
    assert jnp.allclose(out_bf16.astype(jnp.float32), ref, atol=2e-1, rtol=2e-2), \
        "mismatch (bf16 output)"

    print("KERNEL_OK")
</pallas_src>

<mosaic_0001>
module attributes {stable_mosaic.version = 11 : i64} {
  func.func @_linear_relu_kernel_f32(%arg0: i32, %arg1: i32, %arg2: i32, %arg3: memref<32x512xbf16, #tpu.memory_space<vmem>>, %arg4: memref<512x256xbf16, #tpu.memory_space<vmem>>, %arg5: memref<1x256xf32, #tpu.memory_space<vmem>>, %arg6: memref<32x256xf32, #tpu.memory_space<vmem>>) attributes {dimension_semantics = [#tpu.dimension_semantics<parallel>, #tpu.dimension_semantics<parallel>, #tpu.dimension_semantics<arbitrary>], iteration_bounds = array<i64: 1, 1, 1>, scalar_prefetch = 0 : i64, scratch_operands = 0 : i64, tpu.core_type = #tpu.core_type<tc>, window_params = [{transform_indices = @transform_0, window_bounds = array<i64: 32, 512>}, {transform_indices = @transform_1, window_bounds = array<i64: 512, 256>}, {transform_indices = @transform_2, window_bounds = array<i64: 1, 256>}, {transform_indices = @transform_3, window_bounds = array<i64: 32, 256>}]} {
    %c0 = arith.constant 0 : index
    %c0_0 = arith.constant 0 : index
    %0 = vector.load %arg3[%c0, %c0_0] : memref<32x512xbf16, #tpu.memory_space<vmem>>, vector<32x512xbf16>
    %c0_1 = arith.constant 0 : index
    %c0_2 = arith.constant 0 : index
    %1 = vector.load %arg4[%c0_1, %c0_2] : memref<512x256xbf16, #tpu.memory_space<vmem>>, vector<512x256xbf16>
    %cst = arith.constant dense<0.000000e+00> : vector<32x256xf32>
    %2 = tpu.matmul %0, %1, %cst {dimension_numbers = #tpu.dot_dimension_numbers<[1], [0], [0], [1], [0, 0, 1, 1], [], []>} : vector<32x512xbf16>, vector<512x256xbf16>, vector<32x256xf32> -> vector<32x256xf32>
    %c0_i32 = arith.constant 0 : i32
    %3 = arith.cmpi eq, %arg2, %c0_i32 : i32
    %4 = arith.extui %3 : i1 to i32
    %c0_i32_3 = arith.constant 0 : i32
    %5 = arith.cmpi ne, %4, %c0_i32_3 : i32
    scf.if %5 {
      %c0_8 = arith.constant 0 : index
      %c0_9 = arith.constant 0 : index
      %12 = vector.load %arg6[%c0_8, %c0_9] : memref<32x256xf32, #tpu.memory_space<vmem>>, vector<32x256xf32>
      tpu.vector_store %arg6[%c0_8, %c0_9], %2 {strides = array<i32>} : memref<32x256xf32, #tpu.memory_space<vmem>>, vector<32x256xf32>,
    } else {
    }
    %c0_i32_4 = arith.constant 0 : i32
    %6 = arith.cmpi ne, %arg2, %c0_i32_4 : i32
    %7 = arith.extui %6 : i1 to i32
    %c0_i32_5 = arith.constant 0 : i32
    %8 = arith.cmpi ne, %7, %c0_i32_5 : i32
    scf.if %8 {
      %c0_8 = arith.constant 0 : index
      %c0_9 = arith.constant 0 : index
      %12 = vector.load %arg6[%c0_8, %c0_9] : memref<32x256xf32, #tpu.memory_space<vmem>>, vector<32x256xf32>
      %13 = arith.addf %12, %2 : vector<32x256xf32>
      %c0_10 = arith.constant 0 : index
      %c0_11 = arith.constant 0 : index
      %14 = vector.load %arg6[%c0_10, %c0_11] : memref<32x256xf32, #tpu.memory_space<vmem>>, vector<32x256xf32>
      tpu.vector_store %arg6[%c0_10, %c0_11], %13 {strides = array<i32>} : memref<32x256xf32, #tpu.memory_space<vmem>>, vector<32x256xf32>,
    } else {
    }
    %c0_i32_6 = arith.constant 0 : i32
    %9 = arith.cmpi eq, %arg2, %c0_i32_6 : i32
    %10 = arith.extui %9 : i1 to i32
    %c0_i32_7 = arith.constant 0 : i32
    %11 = arith.cmpi ne, %10, %c0_i32_7 : i32
    scf.if %11 {
      %c0_8 = arith.constant 0 : index
      %c0_9 = arith.constant 0 : index
      %12 = vector.load %arg6[%c0_8, %c0_9] : memref<32x256xf32, #tpu.memory_space<vmem>>, vector<32x256xf32>
      %c0_10 = arith.constant 0 : index
      %c0_11 = arith.constant 0 : index
      %13 = vector.load %arg5[%c0_10, %c0_11] : memref<1x256xf32, #tpu.memory_space<vmem>>, vector<1x256xf32>
      %14 = vector.broadcast %13 : vector<1x256xf32> to vector<32x256xf32>
      %15 = arith.addf %12, %14 : vector<32x256xf32>
      %cst_12 = arith.constant 0.000000e+00 : f32
      %16 = vector.broadcast %cst_12 : f32 to vector<32x256xf32>
      %17 = arith.maximumf %15, %16 : vector<32x256xf32>
      %c0_13 = arith.constant 0 : index
      %c0_14 = arith.constant 0 : index
      %18 = vector.load %arg6[%c0_13, %c0_14] : memref<32x256xf32, #tpu.memory_space<vmem>>, vector<32x256xf32>
      tpu.vector_store %arg6[%c0_13, %c0_14], %17 {strides = array<i32>} : memref<32x256xf32, #tpu.memory_space<vmem>>, vector<32x256xf32>,
    } else {
    }
    return
  }
  func.func @transform_0(%arg0: i32, %arg1: i32, %arg2: i32) -> (i32, i32) {
    %c0_i32 = arith.constant 0 : i32
    return %arg0, %arg2 : i32, i32
  }
  func.func @transform_1(%arg0: i32, %arg1: i32, %arg2: i32) -> (i32, i32) {
    %c0_i32 = arith.constant 0 : i32
    return %arg2, %arg1 : i32, i32
  }
  func.func @transform_2(%arg0: i32, %arg1: i32, %arg2: i32) -> (i32, i32) {
    %c0_i32 = arith.constant 0 : i32
    %c0_i32_0 = arith.constant 0 : i32
    return %c0_i32, %arg1 : i32, i32
  }
  func.func @transform_3(%arg0: i32, %arg1: i32, %arg2: i32) -> (i32, i32) {
    %c0_i32 = arith.constant 0 : i32
    return %arg0, %arg1 : i32, i32
  }
}

</mosaic_0001>

<llo_original>
// kernel: tpu_custom_call.1
$region0: #{tpu_custom_call.1}
  #allocation0 [shape = 'u32[]', space=smem, size = 0x4, offset = 0x4, fixed_abs, tag = 'smem constant byte address 0x4 - core index']
  #allocation1 [shape = 'u32[144,128]{1,0:T(1,128)}', space=vmem, size = 0x12000, scoped, tag = 'internal scratch']
  %s0 = inlined_call_operand.hbm [shape: bf16[32,512], index: 0, kind: input, shape index: {}]
  %s1 = inlined_call_operand.hbm [shape: bf16[512,256], index: 1, kind: input, shape index: {}]
  %s2 = inlined_call_operand.hbm [shape: f32[1,256], index: 2, kind: input, shape index: {}]
  %s3 = inlined_call_operand.hbm [shape: f32[32,256], index: 3, kind: output, shape index: {}]
  %s4 = sld [smem:[#allocation0]]
  $region46: #{tpu_custom_call.1} parent=0
    _
  %s6 = ssub.s32 1, %s4
  %s7 = scalar_select 0, %s6, %s4
  $region1: #{tpu_custom_call.1} parent=0
    #allocation2 [shape = 'u8[32768]{0}', space=vmem, size = 0x8000, scoped, tag = 'input window, operand 0, single buffered']
    #allocation3 [shape = 's32[1]{0}', space=sflag, size = 0x4, scoped, tag = 'scoped memory for tpu_custom_call.1']
    #allocation4 [shape = 's32[1]{0}', space=sflag, size = 0x4, scoped, tag = 'scoped memory for tpu_custom_call.1']
    #allocation5 [shape = 'u8[262144]{0}', space=vmem, size = 0x40000, scoped, tag = 'input window, operand 1, single buffered']
    #allocation6 [shape = 's32[1]{0}', space=sflag, size = 0x4, scoped, tag = 'scoped memory for tpu_custom_call.1']
    #allocation7 [shape = 'u8[1024]{0}', space=vmem, size = 0x400, scoped, tag = 'input window, operand 2, single buffered']
    #allocation8 [shape = 'u8[32768]{0}', space=vmem, size = 0x8000, scoped, tag = 'output window, operand 0, single buffered']
    %8 = vsyncpa [#allocation3], 0
    %9 = vsyncpa [#allocation6], 0
    %10 = vsyncpa [#allocation4], 0
    // Predicated region
    $region2: #{tpu_custom_call.1} parent=1 // pred_check
      _
    $region3: #{tpu_custom_call.1} parent=1 // pred_check_branch
      %12 = sbr.rel (0) target = $region5
    $region4: #{tpu_custom_call.1} parent=1 // pred_region
      %s14 = ssub.s32 1024, 1024
      %15 = vsyncadd [#allocation3], %s14
      %s16 = sshll.u32 [#allocation2], 4
      %s17 = int_to_ptr.vmem [resolvable:$true] %s16
      %22 = dma.hbm_to_vmem [thread:$0]  %s0, 1024, %s17, [#allocation3], 256, 256, 16
    $region5: #{tpu_custom_call.1} parent=1 // pred_fallthru
      _
    // Predicated region
    $region6: #{tpu_custom_call.1} parent=1 // pred_check
      _
    $region7: #{tpu_custom_call.1} parent=1 // pred_check_branch
      %24 = sbr.rel (0) target = $region9
    $region8: #{tpu_custom_call.1} parent=1 // pred_region
      %s26 = ssub.s32 8192, 8192
      %27 = vsyncadd [#allocation6], %s26
      %s28 = sshll.u32 [#allocation5], 4
      %s29 = int_to_ptr.vmem [resolvable:$true] %s28
      %34 = dma.hbm_to_vmem [thread:$0]  %s1, 8192, %s29, [#allocation6], 128, 128, 8
    $region9: #{tpu_custom_call.1} parent=1 // pred_fallthru
      _
    // Predicated region
    $region10: #{tpu_custom_call.1} parent=1 // pred_check
      _
    $region11: #{tpu_custom_call.1} parent=1 // pred_check_branch
      %36 = sbr.rel (0) target = $region13
    $region12: #{tpu_custom_call.1} parent=1 // pred_region
      %s38 = ssub.s32 32, 32
      %39 = vsyncadd [#allocation6], %s38
      %s41 = sshll.u32 [#allocation7], 4
      %s42 = int_to_ptr.vmem [resolvable:$true] %s41
      %44 = dma.hbm_to_vmem [thread:$0]  %s2, 32, %s42, [#allocation6]
    $region13: #{tpu_custom_call.1} parent=1 // pred_fallthru
      _
    // Predicated region
    $region14: #{tpu_custom_call.1} parent=1 // pred_check
      _
    $region15: #{tpu_custom_call.1} parent=1 // pred_check_branch
      %46 = sbr.rel (0) target = $region17
    $region16: #{tpu_custom_call.1} parent=1 // pred_region
      %47 = dma.done [#allocation3], 1024
    $region17: #{tpu_custom_call.1} parent=1 // pred_fallthru
      _
    // Predicated region
    $region18: #{tpu_custom_call.1} parent=1 // pred_check
      _
    $region19: #{tpu_custom_call.1} parent=1 // pred_check_branch
      %49 = sbr.rel (0) target = $region21
    $region20: #{tpu_custom_call.1} parent=1 // pred_region
      %50 = dma.done [#allocation6], 8192
    $region21: #{tpu_custom_call.1} parent=1 // pred_fallthru
      _
    // Predicated region
    $region22: #{tpu_custom_call.1} parent=1 // pred_check
      _
    $region23: #{tpu_custom_call.1} parent=1 // pred_check_branch
      %52 = sbr.rel (0) target = $region25
    $region24: #{tpu_custom_call.1} parent=1 // pred_region
      %53 = dma.done [#allocation6], 32
    $region25: #{tpu_custom_call.1} parent=1 // pred_fallthru
      _
    %v54 = vld [vmem:[#allocation2] sm:$0xff]
    %v55 = vld [vmem:[#allocation2 + $0x8] sm:$0xff]
    %v56 = vld [vmem:[#allocation2 + $0x10] sm:$0xff]
    %v57 = vld [vmem:[#allocation2 + $0x18] sm:$0xff]
    %v58 = vld [vmem:[#allocation2 + $0x20] sm:$0xff]
    %v59 = vld [vmem:[#allocation2 + $0x28] sm:$0xff]
    %v60 = vld [vmem:[#allocation2 + $0x30] sm:$0xff]
    %v61 = vld [vmem:[#allocation2 + $0x38] sm:$0xff]
    %v62 = vld [vmem:[#allocation5] sm:$0xff]
    %v63 = vld [vmem:[#allocation5 + $0x8] sm:$0xff]
    %v64 = vld [vmem:[#allocation5 + $0x10] sm:$0xff]
    %v65 = vld [vmem:[#allocation5 + $0x18] sm:$0xff]
    %v66 = vld [vmem:[#allocation5 + $0x20] sm:$0xff]
    %v67 = vld [vmem:[#allocation5 + $0x28] sm:$0xff]
    %v68 = vld [vmem:[#allocation5 + $0x30] sm:$0xff]
    %v69 = vld [vmem:[#allocation5 + $0x38] sm:$0xff]
    %v70 = vld [vmem:[#allocation5 + $0x40] sm:$0xff]
    %v71 = vld [vmem:[#allocation5 + $0x48] sm:$0xff]
    %v72 = vld [vmem:[#allocation5 + $0x50] sm:$0xff]
    %v73 = vld [vmem:[#allocation5 + $0x58] sm:$0xff]
    %v74 = vld [vmem:[#allocation5 + $0x60] sm:$0xff]
    %v75 = vld [vmem:[#allocation5 + $0x68] sm:$0xff]
    %v76 = vld [vmem:[#allocation5 + $0x70] sm:$0xff]
    %v77 = vld [vmem:[#allocation5 + $0x78] sm:$0xff]
    %v78 = vld [vmem:[#allocation5 + $0x80] sm:$0xff]
    %v79 = vld [vmem:[#allocation5 + $0x88] sm:$0xff]
    %v80 = vld [vmem:[#allocation5 + $0x90] sm:$0xff]
    %v81 = vld [vmem:[#allocation5 + $0x98] sm:$0xff]
    %v82 = vld [vmem:[#allocation5 + $0xa0] sm:$0xff]
    %v83 = vld [vmem:[#allocation5 + $0xa8] sm:$0xff]
    %v84 = vld [vmem:[#allocation5 + $0xb0] sm:$0xff]
    %v85 = vld [vmem:[#allocation5 + $0xb8] sm:$0xff]
    %v86 = vld [vmem:[#allocation5 + $0xc0] sm:$0xff]
    %v87 = vld [vmem:[#allocation5 + $0xc8] sm:$0xff]
    %v88 = vld [vmem:[#allocation5 + $0xd0] sm:$0xff]
    %v89 = vld [vmem:[#allocation5 + $0xd8] sm:$0xff]
    %v90 = vld [vmem:[#allocation5 + $0xe0] sm:$0xff]
    %v91 = vld [vmem:[#allocation5 + $0xe8] sm:$0xff]
    %v92 = vld [vmem:[#allocation5 + $0xf0] sm:$0xff]
    %v93 = vld [vmem:[#allocation5 + $0xf8] sm:$0xff]
    %v94 = vld [vmem:[#allocation5 + $0x100] sm:$0xff]
    %v95 = vld [vmem:[#allocation5 + $0x108] sm:$0xff]
    %v96 = vld [vmem:[#allocation5 + $0x110] sm:$0xff]
    %v97 = vld [vmem:[#allocation5 + $0x118] sm:$0xff]
    %v98 = vld [vmem:[#allocation5 + $0x120] sm:$0xff]
    %v99 = vld [vmem:[#allocation5 + $0x128] sm:$0xff]
    %v100 = vld [vmem:[#allocation5 + $0x130] sm:$0xff]
    %v101 = vld [vmem:[#allocation5 + $0x138] sm:$0xff]
    %v102 = vld [vmem:[#allocation5 + $0x140] sm:$0xff]
    %v103 = vld [vmem:[#allocation5 + $0x148] sm:$0xff]
    %v104 = vld [vmem:[#allocation5 + $0x150] sm:$0xff]
    %v105 = vld [vmem:[#allocation5 + $0x158] sm:$0xff]
    %v106 = vld [vmem:[#allocation5 + $0x160] sm:$0xff]
    %v107 = vld [vmem:[#allocation5 + $0x168] sm:$0xff]
    %v108 = vld [vmem:[#allocation5 + $0x170] sm:$0xff]
    %v109 = vld [vmem:[#allocation5 + $0x178] sm:$0xff]
    %v110 = vld [vmem:[#allocation5 + $0x180] sm:$0xff]
    %v111 = vld [vmem:[#allocation5 + $0x188] sm:$0xff]
    %v112 = vld [vmem:[#allocation5 + $0x190] sm:$0xff]
    %v113 = vld [vmem:[#allocation5 + $0x198] sm:$0xff]
    %v114 = vld [vmem:[#allocation5 + $0x1a0] sm:$0xff]
    %v115 = vld [vmem:[#allocation5 + $0x1a8] sm:$0xff]
    %v116 = vld [vmem:[#allocation5 + $0x1b0] sm:$0xff]
    %v117 = vld [vmem:[#allocation5 + $0x1b8] sm:$0xff]
    %v118 = vld [vmem:[#allocation5 + $0x1c0] sm:$0xff]
    %v119 = vld [vmem:[#allocation5 + $0x1c8] sm:$0xff]
    %v120 = vld [vmem:[#allocation5 + $0x1d0] sm:$0xff]
    %v121 = vld [vmem:[#allocation5 + $0x1d8] sm:$0xff]
    %v122 = vld [vmem:[#allocation5 + $0x1e0] sm:$0xff]
    %v123 = vld [vmem:[#allocation5 + $0x1e8] sm:$0xff]
    %v124 = vld [vmem:[#allocation5 + $0x1f0] sm:$0xff]
    %v125 = vld [vmem:[#allocation5 + $0x1f8] sm:$0xff]
    %v134 = vunpack.c.l.b16 %v54
    %v135 = vunpack.c.h.b16 %v54
    %v136 = vunpack.c.l.b16 %v55
    %v137 = vunpack.c.h.b16 %v55
    %v138 = vunpack.c.l.b16 %v56
    %v139 = vunpack.c.h.b16 %v56
    %v140 = vunpack.c.l.b16 %v57
    %v141 = vunpack.c.h.b16 %v57
    %v142 = vunpack.c.l.b16 %v58
    %v143 = vunpack.c.h.b16 %v58
    %v144 = vunpack.c.l.b16 %v59
    %v145 = vunpack.c.h.b16 %v59
    %v146 = vunpack.c.l.b16 %v60
    %v147 = vunpack.c.h.b16 %v60
    %v148 = vunpack.c.l.b16 %v61
    %v149 = vunpack.c.h.b16 %v61
    %v150 = vpack.c.b16 %v138, %v134
    %v151 = vpack.c.b16 %v139, %v135
    %v152 = vpack.c.b16 %v140, %v136
    %v153 = vpack.c.b16 %v141, %v137
    %v154 = vpack.c.b16 %v146, %v142
    %v155 = vpack.c.b16 %v147, %v143
    %v156 = vpack.c.b16 %v148, %v144
    %v157 = vpack.c.b16 %v149, %v145
    %v230 = vunpack.c.l.b16 %v62
    %v231 = vunpack.c.h.b16 %v62
    %v232 = vunpack.c.l.b16 %v63
    %v233 = vunpack.c.h.b16 %v63
    %v234 = vunpack.c.l.b16 %v64
    %v235 = vunpack.c.h.b16 %v64
    %v236 = vunpack.c.l.b16 %v65
    %v237 = vunpack.c.h.b16 %v65
    %v238 = vunpack.c.l.b16 %v66
    %v239 = vunpack.c.h.b16 %v66
    %v240 = vunpack.c.l.b16 %v67
    %v241 = vunpack.c.h.b16 %v67
    %v242 = vunpack.c.l.b16 %v68
    %v243 = vunpack.c.h.b16 %v68
    %v244 = vunpack.c.l.b16 %v69
    %v245 = vunpack.c.h.b16 %v69
    %v246 = vunpack.c.l.b16 %v70
    %v247 = vunpack.c.h.b16 %v70
    %v248 = vunpack.c.l.b16 %v71
    %v249 = vunpack.c.h.b16 %v71
    %v250 = vunpack.c.l.b16 %v72
    %v251 = vunpack.c.h.b16 %v72
    %v252 = vunpack.c.l.b16 %v73
    %v253 = vunpack.c.h.b16 %v73
    %v254 = vunpack.c.l.b16 %v74
    %v255 = vunpack.c.h.b16 %v74
    %v256 = vunpack.c.l.b16 %v75
    %v257 = vunpack.c.h.b16 %v75
    %v258 = vunpack.c.l.b16 %v76
    %v259 = vunpack.c.h.b16 %v76
    %v260 = vunpack.c.l.b16 %v77
    %v261 = vunpack.c.h.b16 %v77
    %v262 = vunpack.c.l.b16 %v78
    %v263 = vunpack.c.h.b16 %v78
    %v264 = vunpack.c.l.b16 %v79
    %v265 = vunpack.c.h.b16 %v79
    %v266 = vunpack.c.l.b16 %v80
    %v267 = vunpack.c.h.b16 %v80
    %v268 = vunpack.c.l.b16 %v81
    %v269 = vunpack.c.h.b16 %v81
    %v270 = vunpack.c.l.b16 %v82
    %v271 = vunpack.c.h.b16 %v82
    %v272 = vunpack.c.l.b16 %v83
    %v273 = vunpack.c.h.b16 %v83
    %v274 = vunpack.c.l.b16 %v84
    %v275 = vunpack.c.h.b16 %v84
    %v276 = vunpack.c.l.b16 %v85
    %v277 = vunpack.c.h.b16 %v85
    %v278 = vunpack.c.l.b16 %v86
    %v279 = vunpack.c.h.b16 %v86
    %v280 = vunpack.c.l.b16 %v87
    %v281 = vunpack.c.h.b16 %v87
    %v282 = vunpack.c.l.b16 %v88
    %v283 = vunpack.c.h.b16 %v88
    %v284 = vunpack.c.l.b16 %v89
    %v285 = vunpack.c.h.b16 %v89
    %v286 = vunpack.c.l.b16 %v90
    %v287 = vunpack.c.h.b16 %v90
    %v288 = vunpack.c.l.b16 %v91
    %v289 = vunpack.c.h.b16 %v91
    %v290 = vunpack.c.l.b16 %v92
    %v291 = vunpack.c.h.b16 %v92
    %v292 = vunpack.c.l.b16 %v93
    %v293 = vunpack.c.h.b16 %v93
    %v294 = vunpack.c.l.b16 %v94
    %v295 = vunpack.c.h.b16 %v94
    %v296 = vunpack.c.l.b16 %v95
    %v297 = vunpack.c.h.b16 %v95
    %v298 = vunpack.c.l.b16 %v96
    %v299 = vunpack.c.h.b16 %v96
    %v300 = vunpack.c.l.b16 %v97
    %v301 = vunpack.c.h.b16 %v97
    %v302 = vunpack.c.l.b16 %v98
    %v303 = vunpack.c.h.b16 %v98
    %v304 = vunpack.c.l.b16 %v99
    %v305 = vunpack.c.h.b16 %v99
    %v306 = vunpack.c.l.b16 %v100
    %v307 = vunpack.c.h.b16 %v100
    %v308 = vunpack.c.l.b16 %v101
    %v309 = vunpack.c.h.b16 %v101
    %v310 = vunpack.c.l.b16 %v102
    %v311 = vunpack.c.h.b16 %v102
    %v312 = vunpack.c.l.b16 %v103
    %v313 = vunpack.c.h.b16 %v103
    %v314 = vunpack.c.l.b16 %v104
    %v315 = vunpack.c.h.b16 %v104
    %v316 = vunpack.c.l.b16 %v105
    %v317 = vunpack.c.h.b16 %v105
    %v318 = vunpack.c.l.b16 %v106
    %v319 = vunpack.c.h.b16 %v106
    %v320 = vunpack.c.l.b16 %v107
    %v321 = vunpack.c.h.b16 %v107
    %v322 = vunpack.c.l.b16 %v108
    %v323 = vunpack.c.h.b16 %v108
    %v324 = vunpack.c.l.b16 %v109
    %v325 = vunpack.c.h.b16 %v109
    %v326 = vunpack.c.l.b16 %v110
    %v327 = vunpack.c.h.b16 %v110
    %v328 = vunpack.c.l.b16 %v111
    %v329 = vunpack.c.h.b16 %v111
    %v330 = vunpack.c.l.b16 %v112
    %v331 = vunpack.c.h.b16 %v112
    %v332 = vunpack.c.l.b16 %v113
    %v333 = vunpack.c.h.b16 %v113
    %v334 = vunpack.c.l.b16 %v114
    %v335 = vunpack.c.h.b16 %v114
    %v336 = vunpack.c.l.b16 %v115
    %v337 = vunpack.c.h.b16 %v115
    %v338 = vunpack.c.l.b16 %v116
    %v339 = vunpack.c.h.b16 %v116
    %v340 = vunpack.c.l.b16 %v117
    %v341 = vunpack.c.h.b16 %v117
    %v342 = vunpack.c.l.b16 %v118
    %v343 = vunpack.c.h.b16 %v118
    %v344 = vunpack.c.l.b16 %v119
    %v345 = vunpack.c.h.b16 %v119
    %v346 = vunpack.c.l.b16 %v120
    %v347 = vunpack.c.h.b16 %v120
    %v348 = vunpack.c.l.b16 %v121
    %v349 = vunpack.c.h.b16 %v121
    %v350 = vunpack.c.l.b16 %v122
    %v351 = vunpack.c.h.b16 %v122
    %v352 = vunpack.c.l.b16 %v123
    %v353 = vunpack.c.h.b16 %v123
    %v354 = vunpack.c.l.b16 %v124
    %v355 = vunpack.c.h.b16 %v124
    %v356 = vunpack.c.l.b16 %v125
    %v357 = vunpack.c.h.b16 %v125
    %v358 = vpack.c.b16 %v232, %v230
    %v359 = vpack.c.b16 %v233, %v231
    %v360 = vpack.c.b16 %v236, %v234
    %v361 = vpack.c.b16 %v237, %v235
    %v362 = vpack.c.b16 %v240, %v238
    %v363 = vpack.c.b16 %v241, %v239
    %v364 = vpack.c.b16 %v244, %v242
    %v365 = vpack.c.b16 %v245, %v243
    %v366 = vpack.c.b16 %v248, %v246
    %v367 = vpack.c.b16 %v249, %v247
    %v368 = vpack.c.b16 %v252, %v250
    %v369 = vpack.c.b16 %v253, %v251
    %v370 = vpack.c.b16 %v256, %v254
    %v371 = vpack.c.b16 %v257, %v255
    %v372 = vpack.c.b16 %v260, %v258
    %v373 = vpack.c.b16 %v261, %v259
    %v374 = vpack.c.b16 %v264, %v262
    %v375 = vpack.c.b16 %v265, %v263
    %v376 = vpack.c.b16 %v268, %v266
    %v377 = vpack.c.b16 %v269, %v267
    %v378 = vpack.c.b16 %v272, %v270
    %v379 = vpack.c.b16 %v273, %v271
    %v380 = vpack.c.b16 %v276, %v274
    %v381 = vpack.c.b16 %v277, %v275
    %v382 = vpack.c.b16 %v280, %v278
    %v383 = vpack.c.b16 %v281, %v279
    %v384 = vpack.c.b16 %v284, %v282
    %v385 = vpack.c.b16 %v285, %v283
    %v386 = vpack.c.b16 %v288, %v286
    %v387 = vpack.c.b16 %v289, %v287
    %v388 = vpack.c.b16 %v292, %v290
    %v389 = vpack.c.b16 %v293, %v291
    %v390 = vpack.c.b16 %v296, %v294
    %v391 = vpack.c.b16 %v297, %v295
    %v392 = vpack.c.b16 %v300, %v298
    %v393 = vpack.c.b16 %v301, %v299
    %v394 = vpack.c.b16 %v304, %v302
    %v395 = vpack.c.b16 %v305, %v303
    %v396 = vpack.c.b16 %v308, %v306
    %v397 = vpack.c.b16 %v309, %v307
    %v398 = vpack.c.b16 %v312, %v310
    %v399 = vpack.c.b16 %v313, %v311
    %v400 = vpack.c.b16 %v316, %v314
    %v401 = vpack.c.b16 %v317, %v315
    %v402 = vpack.c.b16 %v320, %v318
    %v403 = vpack.c.b16 %v321, %v319
    %v404 = vpack.c.b16 %v324, %v322
    %v405 = vpack.c.b16 %v325, %v323
    %v406 = vpack.c.b16 %v328, %v326
    %v407 = vpack.c.b16 %v329, %v327
    %v408 = vpack.c.b16 %v332, %v330
    %v409 = vpack.c.b16 %v333, %v331
    %v410 = vpack.c.b16 %v336, %v334
    %v411 = vpack.c.b16 %v337, %v335
    %v412 = vpack.c.b16 %v340, %v338
    %v413 = vpack.c.b16 %v341, %v339
    %v414 = vpack.c.b16 %v344, %v342
    %v415 = vpack.c.b16 %v345, %v343
    %v416 = vpack.c.b16 %v348, %v346
    %v417 = vpack.c.b16 %v349, %v347
    %v418 = vpack.c.b16 %v352, %v350
    %v419 = vpack.c.b16 %v353, %v351
    %v420 = vpack.c.b16 %v356, %v354
    %v421 = vpack.c.b16 %v357, %v355
    %486 = vmatprep.subr.bf16.mxu0 %v359
    %487 = vmatpush1.bf16.msra.mxu0 %v358
    %488 = vmatprep.subr.bf16.mxu0 %v361
    %489 = vmatpush1.bf16.msra.mxu0 %v360
    %490 = vmatprep.subr.bf16.mxu0 %v363
    %491 = vmatpush1.bf16.msra.mxu0 %v362
    %492 = vmatprep.subr.bf16.mxu0 %v365
    %493 = vmatpush1.bf16.msra.mxu0 %v364
    %494 = vmatprep.subr.bf16.mxu0 %v367
    %495 = vmatpush1.bf16.msra.mxu0 %v366
    %496 = vmatprep.subr.bf16.mxu0 %v369
    %497 = vmatpush1.bf16.msra.mxu0 %v368
    %498 = vmatprep.subr.bf16.mxu0 %v371
    %499 = vmatpush1.bf16.msra.mxu0 %v370
    %500 = vmatprep.subr.bf16.mxu0 %v373
    %501 = vmatpush1.bf16.msra.mxu0 %v372
    %502 = vmatprep.subr.bf16.mxu0 %v375
    %503 = vmatpush1.bf16.msra.mxu0 %v374
    %504 = vmatprep.subr.bf16.mxu0 %v377
    %505 = vmatpush1.bf16.msra.mxu0 %v376
    %506 = vmatprep.subr.bf16.mxu0 %v379
    %507 = vmatpush1.bf16.msra.mxu0 %v378
    %508 = vmatprep.subr.bf16.mxu0 %v381
    %509 = vmatpush1.bf16.msra.mxu0 %v380
    %510 = vmatprep.subr.bf16.mxu0 %v383
    %511 = vmatpush1.bf16.msra.mxu0 %v382
    %512 = vmatprep.subr.bf16.mxu0 %v385
    %513 = vmatpush1.bf16.msra.mxu0 %v384
    %514 = vmatprep.subr.bf16.mxu0 %v387
    %515 = vmatpush1.bf16.msra.mxu0 %v386
    %516 = vmatprep.subr.bf16.mxu0 %v389
    %517 = vmatpush1.bf16.msra.mxu0 %v388
    %518 = vmatprep.mubr.bf16.mxu0 %v151
    %519 = vmatmul.mubr.bf16.gmra.mrb[0].mxu0 %v150
    %v520 = vpop.f32.mrb[0].mxu0
    %v521 = vadd.f32 0.0, %v520
    %v522 = vpop.f32.mrb[0].mxu0
    %v523 = vadd.f32 0.0, %v522
    %v524 = vpop.f32.mrb[0].mxu0
    %v525 = vadd.f32 0.0, %v524
    %v526 = vpop.f32.mrb[0].mxu0
    %v527 = vadd.f32 0.0, %v526
    %528 = vmatprep.mubr.bf16.mxu0 %v155
    %529 = vmatmul.mubr.bf16.gmra.mrb[0].mxu0 %v154
    %v530 = vpop.f32.mrb[0].mxu0
    %v531 = vadd.f32 0.0, %v530
    %v532 = vpop.f32.mrb[0].mxu0
    %v533 = vadd.f32 0.0, %v532
    %v534 = vpop.f32.mrb[0].mxu0
    %v535 = vadd.f32 0.0, %v534
    %v536 = vpop.f32.mrb[0].mxu0
    %v537 = vadd.f32 0.0, %v536
    %538 = vdwg.mxu0
    %539 = vmatprep.subr.bf16.mxu0 %v391
    %540 = vmatpush1.bf16.msra.mxu0 %v390
    %541 = vmatprep.subr.bf16.mxu0 %v393
    %542 = vmatpush1.bf16.msra.mxu0 %v392
    %543 = vmatprep.subr.bf16.mxu0 %v395
    %544 = vmatpush1.bf16.msra.mxu0 %v394
    %545 = vmatprep.subr.bf16.mxu0 %v397
    %546 = vmatpush1.bf16.msra.mxu0 %v396
    %547 = vmatprep.subr.bf16.mxu0 %v399
    %548 = vmatpush1.bf16.msra.mxu0 %v398
    %549 = vmatprep.subr.bf16.mxu0 %v401
    %550 = vmatpush1.bf16.msra.mxu0 %v400
    %551 = vmatprep.subr.bf16.mxu0 %v403
    %552 = vmatpush1.bf16.msra.mxu0 %v402
    %553 = vmatprep.subr.bf16.mxu0 %v405
    %554 = vmatpush1.bf16.msra.mxu0 %v404
    %555 = vmatprep.subr.bf16.mxu0 %v407
    %556 = vmatpush1.bf16.msra.mxu0 %v406
    %557 = vmatprep.subr.bf16.mxu0 %v409
    %558 = vmatpush1.bf16.msra.mxu0 %v408
    %559 = vmatprep.subr.bf16.mxu0 %v411
    %560 = vmatpush1.bf16.msra.mxu0 %v410
    %561 = vmatprep.subr.bf16.mxu0 %v413
    %562 = vmatpush1.bf16.msra.mxu0 %v412
    %563 = vmatprep.subr.bf16.mxu0 %v415
    %564 = vmatpush1.bf16.msra.mxu0 %v414
    %565 = vmatprep.subr.bf16.mxu0 %v417
    %566 = vmatpush1.bf16.msra.mxu0 %v416
    %567 = vmatprep.subr.bf16.mxu0 %v419
    %568 = vmatpush1.bf16.msra.mxu0 %v418
    %569 = vmatprep.subr.bf16.mxu0 %v421
    %570 = vmatpush1.bf16.msra.mxu0 %v420
    %571 = vmatprep.mubr.bf16.mxu0 %v153
    %572 = vmatmul.mubr.bf16.gmra.mrb[0].mxu0 %v152
    %v573 = vpop.f32.mrb[0].mxu0
    %v574 = vadd.f32 %v521, %v573
    %v575 = vpop.f32.mrb[0].mxu0
    %v576 = vadd.f32 %v523, %v575
    %v577 = vpop.f32.mrb[0].mxu0
    %v578 = vadd.f32 %v525, %v577
    %v579 = vpop.f32.mrb[0].mxu0
    %v580 = vadd.f32 %v527, %v579
    %581 = vmatprep.mubr.bf16.mxu0 %v157
    %582 = vmatmul.mubr.bf16.gmra.mrb[0].mxu0 %v156
    %v583 = vpop.f32.mrb[0].mxu0
    %v584 = vadd.f32 %v531, %v583
    %v585 = vpop.f32.mrb[0].mxu0
    %v586 = vadd.f32 %v533, %v585
    %v587 = vpop.f32.mrb[0].mxu0
    %v588 = vadd.f32 %v535, %v587
    %v589 = vpop.f32.mrb[0].mxu0
    %v590 = vadd.f32 %v537, %v589
    %591 = vdwg.mxu0
    %p592 = scmp.eq.s32.totalorder 0, 0
    // Predicated region
    $region26: #{tpu_custom_call.1} parent=1 // pred_check
      %p593 = pneg %p592
    $region27: #{tpu_custom_call.1} parent=1 // pred_check_branch
      %595 = sbr.rel (%p593) target = $region29
    $region28: #{tpu_custom_call.1} parent=1 // pred_region
      %596 = vst [vmem:[#allocation8] sm:$0xff] %v574
      %597 = vst [vmem:[#allocation8 + $0x8] sm:$0xff] %v576
      %598 = vst [vmem:[#allocation8 + $0x10] sm:$0xff] %v578
      %599 = vst [vmem:[#allocation8 + $0x18] sm:$0xff] %v580
      %600 = vst [vmem:[#allocation8 + $0x20] sm:$0xff] %v584
      %601 = vst [vmem:[#allocation8 + $0x28] sm:$0xff] %v586
      %602 = vst [vmem:[#allocation8 + $0x30] sm:$0xff] %v588
      %603 = vst [vmem:[#allocation8 + $0x38] sm:$0xff] %v590
    $region29: #{tpu_custom_call.1} parent=1 // pred_fallthru
      _
    %p604 = scmp.ne.s32.totalorder 0, 0
    // Predicated region
    $region30: #{tpu_custom_call.1} parent=1 // pred_check
      %p605 = pneg %p604
    $region31: #{tpu_custom_call.1} parent=1 // pred_check_branch
      %607 = sbr.rel (%p605) target = $region33
    $region32: #{tpu_custom_call.1} parent=1 // pred_region
      %v608 = vld [vmem:[#allocation8] sm:$0xff]
      %v609 = vld [vmem:[#allocation8 + $0x8] sm:$0xff]
      %v610 = vld [vmem:[#allocation8 + $0x10] sm:$0xff]
      %v611 = vld [vmem:[#allocation8 + $0x18] sm:$0xff]
      %v612 = vld [vmem:[#allocation8 + $0x20] sm:$0xff]
      %v613 = vld [vmem:[#allocation8 + $0x28] sm:$0xff]
      %v614 = vld [vmem:[#allocation8 + $0x30] sm:$0xff]
      %v615 = vld [vmem:[#allocation8 + $0x38] sm:$0xff]
      %v616 = vadd.f32 %v608, %v574
      %v617 = vadd.f32 %v609, %v576
      %v618 = vadd.f32 %v610, %v578
      %v619 = vadd.f32 %v611, %v580
      %v620 = vadd.f32 %v612, %v584
      %v621 = vadd.f32 %v613, %v586
      %v622 = vadd.f32 %v614, %v588
      %v623 = vadd.f32 %v615, %v590
      %624 = vst [vmem:[#allocation8] sm:$0xff] %v616
      %625 = vst [vmem:[#allocation8 + $0x8] sm:$0xff] %v617
      %626 = vst [vmem:[#allocation8 + $0x10] sm:$0xff] %v618
      %627 = vst [vmem:[#allocation8 + $0x18] sm:$0xff] %v619
      %628 = vst [vmem:[#allocation8 + $0x20] sm:$0xff] %v620
      %629 = vst [vmem:[#allocation8 + $0x28] sm:$0xff] %v621
      %630 = vst [vmem:[#allocation8 + $0x30] sm:$0xff] %v622
      %631 = vst [vmem:[#allocation8 + $0x38] sm:$0xff] %v623
    $region33: #{tpu_custom_call.1} parent=1 // pred_fallthru
      _
    // Predicated region
    $region34: #{tpu_custom_call.1} parent=1 // pred_check
      %p632 = pneg %p592
    $region35: #{tpu_custom_call.1} parent=1 // pred_check_branch
      %634 = sbr.rel (%p632) target = $region37
    $region36: #{tpu_custom_call.1} parent=1 // pred_region
      %v635 = vld [vmem:[#allocation8] sm:$0xff]
      %v636 = vld [vmem:[#allocation8 + $0x8] sm:$0xff]
      %v637 = vld [vmem:[#allocation8 + $0x10] sm:$0xff]
      %v638 = vld [vmem:[#allocation8 + $0x18] sm:$0xff]
      %v639 = vld [vmem:[#allocation8 + $0x20] sm:$0xff]
      %v640 = vld [vmem:[#allocation8 + $0x28] sm:$0xff]
      %v641 = vld [vmem:[#allocation8 + $0x30] sm:$0xff]
      %v642 = vld [vmem:[#allocation8 + $0x38] sm:$0xff]
      %v643 = vld [vmem:[#allocation7] sm:$0x3]
      %v645 = vlaneseq
      %v646 = vshrl.u32 %v645, 7
      %v647 = vsub.s32 0, %v646
      %v648 = vrot.slane %v643, %v647
      %v649 = vlaneseq
      %v650 = vshrl.u32 %v649, 7
      %v651 = vsub.s32 1, %v650
      %v652 = vrot.slane %v643, %v651
      %v655 = vadd.f32 %v635, %v648
      %v656 = vadd.f32 %v636, %v652
      %v657 = vadd.f32 %v637, %v648
      %v658 = vadd.f32 %v638, %v652
      %v659 = vadd.f32 %v639, %v648
      %v660 = vadd.f32 %v640, %v652
      %v661 = vadd.f32 %v641, %v648
      %v662 = vadd.f32 %v642, %v652
      %v663 = vmax.f32 %v655, 0.0
      %v664 = vmax.f32 %v656, 0.0
      %v665 = vmax.f32 %v657, 0.0
      %v666 = vmax.f32 %v658, 0.0
      %v667 = vmax.f32 %v659, 0.0
      %v668 = vmax.f32 %v660, 0.0
      %v669 = vmax.f32 %v661, 0.0
      %v670 = vmax.f32 %v662, 0.0
      %671 = vst [vmem:[#allocation8] sm:$0xff] %v663
      %672 = vst [vmem:[#allocation8 + $0x8] sm:$0xff] %v664
      %673 = vst [vmem:[#allocation8 + $0x10] sm:$0xff] %v665
      %674 = vst [vmem:[#allocation8 + $0x18] sm:$0xff] %v666
      %675 = vst [vmem:[#allocation8 + $0x20] sm:$0xff] %v667
      %676 = vst [vmem:[#allocation8 + $0x28] sm:$0xff] %v668
      %677 = vst [vmem:[#allocation8 + $0x30] sm:$0xff] %v669
      %678 = vst [vmem:[#allocation8 + $0x38] sm:$0xff] %v670
    $region37: #{tpu_custom_call.1} parent=1 // pred_fallthru
      _
    // Predicated region
    $region38: #{tpu_custom_call.1} parent=1 // pred_check
      _
    $region39: #{tpu_custom_call.1} parent=1 // pred_check_branch
      %680 = sbr.rel (0) target = $region41
    $region40: #{tpu_custom_call.1} parent=1 // pred_region
      %s682 = ssub.s32 1024, 1024
      %683 = vsyncadd [#allocation4], %s682
      %s684 = sshll.u32 [#allocation8], 4
      %s685 = int_to_ptr.vmem [resolvable:$true] %s684
      %690 = dma.vmem_to_hbm [thread:$0]  %s685, 1024, %s3, [#allocation4], 256, 256, 16
    $region41: #{tpu_custom_call.1} parent=1 // pred_fallthru
      _
    // Predicated region
    $region42: #{tpu_custom_call.1} parent=1 // pred_check
      _
    $region43: #{tpu_custom_call.1} parent=1 // pred_check_branch
      %692 = sbr.rel (0) target = $region45
    $region44: #{tpu_custom_call.1} parent=1 // pred_region
      %693 = dma.done [#allocation4], 1024
    $region45: #{tpu_custom_call.1} parent=1 // pred_fallthru
      _
    %694 = vsyncpa [#allocation3], 1
    %695 = vsyncpa [#allocation6], 1
    %696 = vsyncpa [#allocation4], 1

</llo_original>
